<compile_context>
chip_gen: v6e
topology: v6e:2x2x1
jax: 0.10.0
libtpu: 0.0.40
codegen_flags: <defaults>
</compile_context>

<pallas_src>
import jax
import jax.numpy as jnp
from jax import lax
from jax.experimental import pallas as pl
from jax.experimental.pallas import tpu as pltpu


def _make_metapath_kernel(n_total, tile_n, inv_n):
    """Build the kernel closed over static sizes (needed for partial-tile masking)."""
    needs_mask = (n_total % tile_n) != 0

    def kernel(neighs_ref, w_ref, b_ref, out_ref, acc_ref):
        # neighs_ref: (tile_n, D)  w_ref: (32, D)  b_ref: (1, 32)
        # out_ref:    (1, 32)      acc_ref (VMEM scratch): (1, D) f32
        k = pl.program_id(0)
        nk = pl.num_programs(0)

        @pl.when(k == 0)
        def _():
            acc_ref[...] = jnp.zeros_like(acc_ref)

        tile = neighs_ref[...].astype(jnp.float32)          # (tile_n, D)
        if needs_mask:
            # Rows past n_total in the (possibly partial) last block hold
            # undefined data -> zero them before accumulating.
            row = lax.broadcasted_iota(jnp.int32, tile.shape, 0)
            valid = (k * tile_n + row) < n_total
            tile = jnp.where(valid, tile, 0.0)

        acc_ref[...] += jnp.sum(tile, axis=0, keepdims=True)  # (1, D)

        @pl.when(k == nk - 1)
        def _():
            mean_row = acc_ref[...] * inv_n                   # (1, D) f32
            w = w_ref[...].astype(jnp.float32)                # (32, D)
            # F.linear on the mean row: contract D against W's last dim
            # (no transpose materialized).
            lin = lax.dot_general(
                mean_row, w,
                dimension_numbers=(((1,), (1,)), ((), ())),
                preferred_element_type=jnp.float32,
            ) + b_ref[...]                                    # (1, 32)
            # leaky_relu, default negative_slope = 0.01
            out_ref[...] = jnp.where(lin >= 0.0, lin, 0.01 * lin).astype(out_ref.dtype)

    return kernel


def metapath_learner_forward(user_emb, item_emb, neighs_emb, neigh_w, neigh_b,
                             *, tile_n=512):
    """Pallas implementation of MetapathLearner.forward.

    user_emb:   (num_users, user_dim)  -- only shape[0] is used
    item_emb:   unused (kept for signature parity with the PyTorch forward)
    neighs_emb: (N_neigh, item_embedding_dim)
    neigh_w:    (32, item_embedding_dim)
    neigh_b:    (32,)
    returns:    (num_users, 32) float32
    """
    del item_emb  # unused by the reference forward
    num_users = user_emb.shape[0]
    n, d = neighs_emb.shape
    out_dim = neigh_w.shape[0]

    # Neighbor-axis tile: one block if N is small, otherwise a sublane-aligned
    # streaming tile (multiple of 8 rows). 512 x D x 4B double-buffered is tiny,
    # comfortably inside scoped VMEM on v5e/v6e/v7x.
    if n <= tile_n:
        tn = n
    else:
        tn = tile_n
        assert tn % 8 == 0, "tile_n must be a multiple of 8 sublanes"
    grid = (pl.cdiv(n, tn),)

    b2d = neigh_b.reshape(1, out_dim).astype(jnp.float32)

    row = pl.pallas_call(
        _make_metapath_kernel(n, tn, 1.0 / n),
        out_shape=jax.ShapeDtypeStruct((1, out_dim), jnp.float32),
        grid_spec=pltpu.PrefetchScalarGridSpec(
            num_scalar_prefetch=0,
            grid=grid,
            in_specs=[
                pl.BlockSpec((tn, d), lambda k: (k, 0)),        # streamed neighbors
                pl.BlockSpec((out_dim, d), lambda k: (0, 0)),   # W resident
                pl.BlockSpec((1, out_dim), lambda k: (0, 0)),   # bias resident
            ],
            out_specs=pl.BlockSpec((1, out_dim), lambda k: (0, 0)),
            scratch_shapes=[pltpu.VMEM((1, d), jnp.float32)],
        ),
        compiler_params=pltpu.CompilerParams(
            dimension_semantics=("arbitrary",),   # reduction axis
        ),
    )(neighs_emb, neigh_w, b2d)

    # Pure replication across users is done outside the kernel (kernel output
    # stays O(32) instead of O(num_users*32)).
    return jnp.broadcast_to(row, (num_users, out_dim))


def _reference(user_emb, neighs_emb, neigh_w, neigh_b):
    agg = neighs_emb.astype(jnp.float32) @ neigh_w.astype(jnp.float32).T + neigh_b
    mean_emb = jnp.mean(agg, axis=0)
    act = jnp.where(mean_emb >= 0, mean_emb, 0.01 * mean_emb)
    return jnp.broadcast_to(act[None, :], (user_emb.shape[0], neigh_w.shape[0]))


def _xavier_normal(key, shape):
    # torch.nn.init.xavier_normal_ for a (fan_out, fan_in) weight
    fan_out, fan_in = shape
    std = (2.0 / (fan_in + fan_out)) ** 0.5
    return std * jax.random.normal(key, shape, dtype=jnp.float32)


if __name__ == "__main__":
    key = jax.random.PRNGKey(0)
    k_w, k_u, k_i, k_n, k_n2 = jax.random.split(key, 5)

    item_embedding_dim = 32   # config.item_embedding_dim
    out_dim = 32              # fixed in the module
    num_users = 2
    n_neigh = 8

    # Parameters (deterministic, matching __init__ shapes)
    neigh_w = _xavier_normal(k_w, (out_dim, item_embedding_dim))  # (32, D)
    neigh_b = jnp.zeros((out_dim,), dtype=jnp.float32)

    # --- check 1: module-scale shapes (single-block path) ---
    user_emb = jax.random.normal(k_u, (num_users, 16), dtype=jnp.float32)
    item_emb = jax.random.normal(k_i, (num_users, item_embedding_dim), dtype=jnp.float32)
    neighs_emb = jax.random.normal(k_n, (n_neigh, item_embedding_dim), dtype=jnp.float32)

    out = metapath_learner_forward(user_emb, item_emb, neighs_emb, neigh_w, neigh_b)
    out = jax.block_until_ready(out)
    ref = _reference(user_emb, neighs_emb, neigh_w, neigh_b)
    assert out.shape == (num_users, out_dim)
    assert jnp.allclose(out, ref, atol=1e-5, rtol=1e-5)

    # --- check 2: larger N with a non-dividing tile (exercises grid accumulation
    #              + partial-tile masking of the streamed neighbor axis) ---
    n_big = 81                 # 3 tiles of 32 rows, last one partial
    neighs_big = jax.random.normal(k_n2, (n_big, item_embedding_dim), dtype=jnp.float32)
    out2 = metapath_learner_forward(user_emb, item_emb, neighs_big, neigh_w, neigh_b,
                                    tile_n=32)
    out2 = jax.block_until_ready(out2)
    ref2 = _reference(user_emb, neighs_big, neigh_w, neigh_b)
    assert jnp.allclose(out2, ref2, atol=1e-5, rtol=1e-5)

    print("KERNEL_OK")
</pallas_src>

<mosaic_0001>
module attributes {stable_mosaic.version = 11 : i64} {
  func.func @kernel(%arg0: i32, %arg1: memref<8x32xf32, #tpu.memory_space<vmem>>, %arg2: memref<32x32xf32, #tpu.memory_space<vmem>>, %arg3: memref<1x32xf32, #tpu.memory_space<vmem>>, %arg4: memref<1x32xf32, #tpu.memory_space<vmem>>, %arg5: memref<1x32xf32, #tpu.memory_space<vmem>>) attributes {dimension_semantics = [#tpu.dimension_semantics<arbitrary>], iteration_bounds = array<i64: 1>, scalar_prefetch = 0 : i64, scratch_operands = 1 : i64, tpu.core_type = #tpu.core_type<tc>, window_params = [{transform_indices = @transform_0, window_bounds = array<i64: 8, 32>}, {pipeline_mode = #tpu.pipeline_mode<synchronous>, transform_indices = @transform_1, window_bounds = array<i64: 32, 32>}, {pipeline_mode = #tpu.pipeline_mode<synchronous>, transform_indices = @transform_2, window_bounds = array<i64: 1, 32>}, {pipeline_mode = #tpu.pipeline_mode<synchronous>, transform_indices = @transform_3, window_bounds = array<i64: 1, 32>}]} {
    %c0_i32 = arith.constant 0 : i32
    %0 = arith.cmpi eq, %arg0, %c0_i32 : i32
    %1 = arith.extui %0 : i1 to i32
    %c0_i32_0 = arith.constant 0 : i32
    %2 = arith.cmpi ne, %1, %c0_i32_0 : i32
    scf.if %2 {
      %cst_8 = arith.constant 0.000000e+00 : f32
      %12 = vector.broadcast %cst_8 : f32 to vector<1x32xf32>
      %c0_9 = arith.constant 0 : index
      %c0_10 = arith.constant 0 : index
      %13 = vector.load %arg5[%c0_9, %c0_10] : memref<1x32xf32, #tpu.memory_space<vmem>>, vector<1x32xf32>
      tpu.vector_store %arg5[%c0_9, %c0_10], %12 {strides = array<i32>} : memref<1x32xf32, #tpu.memory_space<vmem>>, vector<1x32xf32>,
    } else {
    }
    %c0 = arith.constant 0 : index
    %c0_1 = arith.constant 0 : index
    %3 = vector.load %arg1[%c0, %c0_1] : memref<8x32xf32, #tpu.memory_space<vmem>>, vector<8x32xf32>
    %c0_2 = arith.constant 0 : index
    %c0_3 = arith.constant 0 : index
    %4 = vector.load %arg5[%c0_2, %c0_3] : memref<1x32xf32, #tpu.memory_space<vmem>>, vector<1x32xf32>
    %cst = arith.constant dense<0.000000e+00> : vector<32xf32>
    %5 = vector.multi_reduction <add>, %3, %cst [0] : vector<8x32xf32> to vector<32xf32>
    %6 = vector.shape_cast %5 : vector<32xf32> to vector<1x32xf32>
    %7 = arith.addf %4, %6 : vector<1x32xf32>
    %c0_4 = arith.constant 0 : index
    %c0_5 = arith.constant 0 : index
    %8 = vector.load %arg5[%c0_4, %c0_5] : memref<1x32xf32, #tpu.memory_space<vmem>>, vector<1x32xf32>
    tpu.vector_store %arg5[%c0_4, %c0_5], %7 {strides = array<i32>} : memref<1x32xf32, #tpu.memory_space<vmem>>, vector<1x32xf32>,
    %c0_i32_6 = arith.constant 0 : i32
    %9 = arith.cmpi eq, %arg0, %c0_i32_6 : i32
    %10 = arith.extui %9 : i1 to i32
    %c0_i32_7 = arith.constant 0 : i32
    %11 = arith.cmpi ne, %10, %c0_i32_7 : i32
    scf.if %11 {
      %c0_8 = arith.constant 0 : index
      %c0_9 = arith.constant 0 : index
      %12 = vector.load %arg5[%c0_8, %c0_9] : memref<1x32xf32, #tpu.memory_space<vmem>>, vector<1x32xf32>
      %cst_10 = arith.constant 1.250000e-01 : f32
      %13 = vector.broadcast %cst_10 : f32 to vector<1x32xf32>
      %14 = arith.mulf %12, %13 : vector<1x32xf32>
      %c0_11 = arith.constant 0 : index
      %c0_12 = arith.constant 0 : index
      %15 = vector.load %arg2[%c0_11, %c0_12] : memref<32x32xf32, #tpu.memory_space<vmem>>, vector<32x32xf32>
      %cst_13 = arith.constant dense<0.000000e+00> : vector<1x32xf32>
      %16 = tpu.matmul %14, %15, %cst_13 {dimension_numbers = #tpu.dot_dimension_numbers<[1], [1], [0], [0], [0, 0, 1, 0], [], []>} : vector<1x32xf32>, vector<32x32xf32>, vector<1x32xf32> -> vector<1x32xf32>
      %c0_14 = arith.constant 0 : index
      %c0_15 = arith.constant 0 : index
      %17 = vector.load %arg3[%c0_14, %c0_15] : memref<1x32xf32, #tpu.memory_space<vmem>>, vector<1x32xf32>
      %18 = arith.addf %16, %17 : vector<1x32xf32>
      %cst_16 = arith.constant 0.000000e+00 : f32
      %19 = vector.broadcast %cst_16 : f32 to vector<1x32xf32>
      %20 = arith.cmpf oge, %18, %19 : vector<1x32xf32>
      %cst_17 = arith.constant 0.00999999977 : f32
      %21 = vector.broadcast %cst_17 : f32 to vector<1x32xf32>
      %22 = arith.mulf %21, %18 : vector<1x32xf32>
      %23 = arith.select %20, %18, %22 : vector<1x32xi1>, vector<1x32xf32>
      %c0_18 = arith.constant 0 : index
      %c0_19 = arith.constant 0 : index
      %24 = vector.load %arg4[%c0_18, %c0_19] : memref<1x32xf32, #tpu.memory_space<vmem>>, vector<1x32xf32>
      tpu.vector_store %arg4[%c0_18, %c0_19], %23 {strides = array<i32>} : memref<1x32xf32, #tpu.memory_space<vmem>>, vector<1x32xf32>,
    } else {
    }
    return
  }
  func.func @transform_0(%arg0: i32) -> (i32, i32) {
    %c0_i32 = arith.constant 0 : i32
    %c0_i32_0 = arith.constant 0 : i32
    return %arg0, %c0_i32 : i32, i32
  }
  func.func @transform_1(%arg0: i32) -> (i32, i32) {
    %c0_i32 = arith.constant 0 : i32
    %c0_i32_0 = arith.constant 0 : i32
    %c0_i32_1 = arith.constant 0 : i32
    return %c0_i32, %c0_i32_0 : i32, i32
  }
  func.func @transform_2(%arg0: i32) -> (i32, i32) {
    %c0_i32 = arith.constant 0 : i32
    %c0_i32_0 = arith.constant 0 : i32
    %c0_i32_1 = arith.constant 0 : i32
    return %c0_i32, %c0_i32_0 : i32, i32
  }
  func.func @transform_3(%arg0: i32) -> (i32, i32) {
    %c0_i32 = arith.constant 0 : i32
    %c0_i32_0 = arith.constant 0 : i32
    %c0_i32_1 = arith.constant 0 : i32
    return %c0_i32, %c0_i32_0 : i32, i32
  }
}

</mosaic_0001>

<llo_original>
// kernel: tpu_custom_call.1
$region0: #{tpu_custom_call.1}
  #allocation0 [shape = 'u32[]', space=smem, size = 0x4, offset = 0x4, fixed_abs, tag = 'smem constant byte address 0x4 - core index']
  #allocation1 [shape = 'u32[144,128]{1,0:T(1,128)}', space=vmem, size = 0x12000, scoped, tag = 'internal scratch']
  #allocation2 [shape = 'f32[1,32]{1,0:T(1,128)}', space=vmem, size = 0x200, scoped, tag = 'scratch operand']
  %s0 = inlined_call_operand.hbm [shape: f32[8,32], index: 0, kind: input, shape index: {}]
  %s1 = inlined_call_operand.hbm [shape: f32[32,32], index: 1, kind: input, shape index: {}]
  %s2 = inlined_call_operand.vmem [shape: f32[1,32], index: 2, kind: input, shape index: {}]
  %s3 = inlined_call_operand.hbm [shape: f32[1,32], index: 3, kind: output, shape index: {}]
  %s4 = sld [smem:[#allocation0]]
  $region38: #{tpu_custom_call.1} parent=0
    _
  %s6 = ssub.s32 1, %s4
  %s7 = scalar_select 0, %s6, %s4
  $region1: #{tpu_custom_call.1} parent=0
    #allocation3 [shape = 'u8[4096]{0}', space=vmem, size = 0x1000, scoped, tag = 'input window, operand 0, single buffered']
    #allocation4 [shape = 's32[1]{0}', space=sflag, size = 0x4, scoped, tag = 'scoped memory for tpu_custom_call.1']
    #allocation5 [shape = 's32[1]{0}', space=sflag, size = 0x4, scoped, tag = 'scoped memory for tpu_custom_call.1']
    #allocation6 [shape = 'u8[16384]{0}', space=vmem, size = 0x4000, scoped, tag = 'input window, operand 1, single buffered']
    #allocation7 [shape = 's32[1]{0}', space=sflag, size = 0x4, scoped, tag = 'scoped memory for tpu_custom_call.1']
    #allocation8 [shape = 'u8[512]{0}', space=vmem, size = 0x400, scoped, tag = 'output window, operand 0, single buffered']
    %8 = vsyncpa [#allocation4], 0
    %9 = vsyncpa [#allocation7], 0
    %10 = vsyncpa [#allocation5], 0
    // Predicated region
    $region2: #{tpu_custom_call.1} parent=1 // pred_check
      _
    $region3: #{tpu_custom_call.1} parent=1 // pred_check_branch
      %12 = sbr.rel (0) target = $region5
    $region4: #{tpu_custom_call.1} parent=1 // pred_region
      %s14 = ssub.s32 128, 128
      %15 = vsyncadd [#allocation4], %s14
      %s17 = sshll.u32 [#allocation3], 4
      %s18 = int_to_ptr.vmem [resolvable:$true] %s17
      %20 = dma.hbm_to_vmem [thread:$0]  %s0, 128, %s18, [#allocation4]
    $region5: #{tpu_custom_call.1} parent=1 // pred_fallthru
      _
    // Predicated region
    $region6: #{tpu_custom_call.1} parent=1 // pred_check
      _
    $region7: #{tpu_custom_call.1} parent=1 // pred_check_branch
      %22 = sbr.rel (0) target = $region9
    $region8: #{tpu_custom_call.1} parent=1 // pred_region
      %s24 = ssub.s32 512, 512
      %25 = vsyncadd [#allocation7], %s24
      %s26 = sshll.u32 [#allocation6], 4
      %s27 = int_to_ptr.vmem [resolvable:$true] %s26
      %32 = dma.hbm_to_vmem [thread:$0]  %s1, 512, %s27, [#allocation7], 128, 128, 8
    $region9: #{tpu_custom_call.1} parent=1 // pred_fallthru
      _
    // Predicated region
    $region10: #{tpu_custom_call.1} parent=1 // pred_check
      _
    $region11: #{tpu_custom_call.1} parent=1 // pred_check_branch
      %34 = sbr.rel (0) target = $region13
    $region12: #{tpu_custom_call.1} parent=1 // pred_region
      _
    $region13: #{tpu_custom_call.1} parent=1 // pred_fallthru
      _
    // Predicated region
    $region14: #{tpu_custom_call.1} parent=1 // pred_check
      _
    $region15: #{tpu_custom_call.1} parent=1 // pred_check_branch
      %36 = sbr.rel (0) target = $region17
    $region16: #{tpu_custom_call.1} parent=1 // pred_region
      %37 = dma.done [#allocation4], 128
    $region17: #{tpu_custom_call.1} parent=1 // pred_fallthru
      _
    // Predicated region
    $region18: #{tpu_custom_call.1} parent=1 // pred_check
      _
    $region19: #{tpu_custom_call.1} parent=1 // pred_check_branch
      %39 = sbr.rel (0) target = $region21
    $region20: #{tpu_custom_call.1} parent=1 // pred_region
      %40 = dma.done [#allocation7], 512
    $region21: #{tpu_custom_call.1} parent=1 // pred_fallthru
      _
    %p41 = scmp.eq.s32.totalorder 0, 0
    // Predicated region
    $region22: #{tpu_custom_call.1} parent=1 // pred_check
      %p42 = pneg %p41
    $region23: #{tpu_custom_call.1} parent=1 // pred_check_branch
      %44 = sbr.rel (%p42) target = $region25
    $region24: #{tpu_custom_call.1} parent=1 // pred_region
      %vm45 = vcmask 253952
      %46 = vst.msk [vmem:[#allocation2] sm:$0x1] %vm45, 0.0
    $region25: #{tpu_custom_call.1} parent=1 // pred_fallthru
      _
    %v47 = vld [vmem:[#allocation3] sm:$0xff]
    %v48 = vld [vmem:[#allocation2] sm:$0x1]
    %vm49 = vcmask 261120
    %v50 = vsel %vm49, %v47, 0.0
    %v51 = vrot.slane %v50, 4
    %v52 = vadd.f32 %v50, %v51
    %v53 = vrot.slane %v52, 2
    %v54 = vadd.f32 %v52, %v53
    %v55 = vrot.slane %v54, 1
    %v56 = vadd.f32 %v54, %v55
    %v57 = vadd.f32 %v48, %v56
    %vm58 = vcmask 253952
    %59 = vst.msk [vmem:[#allocation2] sm:$0x1] %vm58, %v57
    // Predicated region
    $region26: #{tpu_custom_call.1} parent=1 // pred_check
      %p60 = pneg %p41
    $region27: #{tpu_custom_call.1} parent=1 // pred_check_branch
      %62 = sbr.rel (%p60) target = $region29
    $region28: #{tpu_custom_call.1} parent=1 // pred_region
      %v63 = vld [vmem:[#allocation2] sm:$0x1]
      %v64 = vmul.f32 %v63, 0.125
      %v65 = vld [vmem:[#allocation6] sm:$0xff]
      %v66 = vld [vmem:[#allocation6 + $0x8] sm:$0xff]
      %v67 = vld [vmem:[#allocation6 + $0x10] sm:$0xff]
      %v68 = vld [vmem:[#allocation6 + $0x18] sm:$0xff]
      %v69 = vld [vmem:[%s2] sm:$0x1]
      %v71 = vsel %vm49, %v64, 0
      %v74 = vsel %vm49, %v65, 0
      %v77 = vsel %vm49, %v66, 0
      %v80 = vsel %vm49, %v67, 0
      %v83 = vsel %vm49, %v68, 0
      %85 = vmatprep.subr.mxu0 0.0
      %86 = vmatpush1.xpose.msra.mxu0 0.0
      %87 = vmatprep.subr.mxu0 0.0
      %88 = vmatpush1.xpose.msra.mxu0 0.0
      %89 = vmatprep.subr.mxu0 0.0
      %90 = vmatpush1.xpose.msra.mxu0 0.0
      %91 = vmatprep.subr.mxu0 0.0
      %92 = vmatpush1.xpose.msra.mxu0 0.0
      %93 = vmatprep.subr.mxu0 0.0
      %94 = vmatpush1.xpose.msra.mxu0 0.0
      %95 = vmatprep.subr.mxu0 0.0
      %96 = vmatpush1.xpose.msra.mxu0 0.0
      %97 = vmatprep.subr.mxu0 0.0
      %98 = vmatpush1.xpose.msra.mxu0 0.0
      %99 = vmatprep.subr.mxu0 0.0
      %100 = vmatpush1.xpose.msra.mxu0 0.0
      %101 = vmatprep.subr.mxu0 0.0
      %102 = vmatpush1.xpose.msra.mxu0 0.0
      %103 = vmatprep.subr.mxu0 0.0
      %104 = vmatpush1.xpose.msra.mxu0 0.0
      %105 = vmatprep.subr.mxu0 0.0
      %106 = vmatpush1.xpose.msra.mxu0 0.0
      %107 = vmatprep.subr.mxu0 0.0
      %108 = vmatpush1.xpose.msra.mxu0 0.0
      %109 = vmatprep.subr.mxu0 0.0
      %110 = vmatpush1.xpose.msra.mxu0 %v83
      %111 = vmatprep.subr.mxu0 0.0
      %112 = vmatpush1.xpose.msra.mxu0 %v80
      %113 = vmatprep.subr.mxu0 0.0
      %114 = vmatpush1.xpose.msra.mxu0 %v77
      %115 = vmatprep.subr.mxu0 0.0
      %116 = vmatpush1.xpose.msra.mxu0 %v74
      %117 = vmatprep.subr.mxu0 0.0
      %118 = vmatpush2.xpose.msra.mxu0 0.0
      %119 = vmatprep.subr.mxu0 0.0
      %120 = vmatpush2.xpose.msra.mxu0 0.0
      %121 = vmatprep.subr.mxu0 0.0
      %122 = vmatpush2.xpose.msra.mxu0 0.0
      %123 = vmatprep.subr.mxu0 0.0
      %124 = vmatpush2.xpose.msra.mxu0 0.0
      %125 = vmatprep.subr.mxu0 0.0
      %126 = vmatpush2.xpose.msra.mxu0 0.0
      %127 = vmatprep.subr.mxu0 0.0
      %128 = vmatpush2.xpose.msra.mxu0 0.0
      %129 = vmatprep.subr.mxu0 0.0
      %130 = vmatpush2.xpose.msra.mxu0 0.0
      %131 = vmatprep.subr.mxu0 0.0
      %132 = vmatpush2.xpose.msra.mxu0 0.0
      %133 = vmatprep.subr.mxu0 0.0
      %134 = vmatpush2.xpose.msra.mxu0 0.0
      %135 = vmatprep.subr.mxu0 0.0
      %136 = vmatpush2.xpose.msra.mxu0 0.0
      %137 = vmatprep.subr.mxu0 0.0
      %138 = vmatpush2.xpose.msra.mxu0 0.0
      %139 = vmatprep.subr.mxu0 0.0
      %140 = vmatpush2.xpose.msra.mxu0 0.0
      %141 = vmatprep.subr.mxu0 0.0
      %142 = vmatpush2.xpose.msra.mxu0 0.0
      %143 = vmatprep.subr.mxu0 0.0
      %144 = vmatpush2.xpose.msra.mxu0 0.0
      %145 = vmatprep.subr.mxu0 0.0
      %146 = vmatpush2.xpose.msra.mxu0 0.0
      %147 = vmatprep.subr.mxu0 0.0
      %148 = vmatpush2.xpose.msra.mxu0 0.0
      %149 = vmatprep.mubr.f32.mxu0 0.0
      %150 = vmatmul.mubr.f32.gmra.mxu0 %v71
      %v151 = vpop.f32.mrf.mxu0
      %v152 = vadd.f32 %v69, %v151
      %v153 = vpop.f32.mrf.mxu0
      %154 = vdwg.mxu0
      %vm155 = vcmp.ge.f32.partialorder %v152, 0.0
      %v156 = vmul.f32 %v152, 0.01
      %v157 = vsel %vm155, %v152, %v156
      %158 = vst.msk [vmem:[#allocation8] sm:$0x1] %vm58, %v157
    $region29: #{tpu_custom_call.1} parent=1 // pred_fallthru
      _
    // Predicated region
    $region30: #{tpu_custom_call.1} parent=1 // pred_check
      _
    $region31: #{tpu_custom_call.1} parent=1 // pred_check_branch
      %160 = sbr.rel (0) target = $region33
    $region32: #{tpu_custom_call.1} parent=1 // pred_region
      %s162 = ssub.s32 16, 16
      %163 = vsyncadd [#allocation5], %s162
      %s165 = sshll.u32 [#allocation8], 4
      %s166 = int_to_ptr.vmem [resolvable:$true] %s165
      %168 = dma.vmem_to_hbm [thread:$0]  %s166, 16, %s3, [#allocation5]
    $region33: #{tpu_custom_call.1} parent=1 // pred_fallthru
      _
    // Predicated region
    $region34: #{tpu_custom_call.1} parent=1 // pred_check
      _
    $region35: #{tpu_custom_call.1} parent=1 // pred_check_branch
      %170 = sbr.rel (0) target = $region37
    $region36: #{tpu_custom_call.1} parent=1 // pred_region
      %171 = dma.done [#allocation5], 16
    $region37: #{tpu_custom_call.1} parent=1 // pred_fallthru
      _
    %172 = vsyncpa [#allocation4], 1
    %173 = vsyncpa [#allocation7], 1
    %174 = vsyncpa [#allocation5], 1

</llo_original>
